<compile_context>
chip_gen: v7x
topology: tpu7x:2x2x1
jax: 0.10.0
libtpu: 0.0.40
codegen_flags: <defaults>
</compile_context>

<pallas_src>
import jax
import jax.numpy as jnp
from jax.experimental import pallas as pl
from jax.experimental.pallas import tpu as pltpu

_LANE = 128
_ROW_ALIGN = 32  # multiple of the sublane packing for f32(8)/bf16(16)/int8(32)


def _exp_kernel(x_ref, o_ref):
    # Whole-tile elementwise exp (EUP transcendental slot; HBM BW is the limit).
    o_ref[...] = jnp.exp(x_ref[...])


def _round_up(x: int, m: int) -> int:
    return (x + m - 1) // m * m


def exp_pallas(x: jax.Array, *, cols: int = 1024,
               target_block_bytes: int = 4 * 1024 * 1024) -> jax.Array:
    """Compute jnp.exp(x) via a Pallas TPU kernel. Works for any shape/dtype."""
    orig_shape = x.shape
    orig_dtype = x.dtype
    n = int(x.size)
    if n == 0:
        return x

    itemsize = jnp.dtype(orig_dtype).itemsize

    # Lane-dense column count (multiple of 128).
    cols = max(_LANE, _round_up(cols, _LANE))

    # Flatten and pad up to a whole number of lane-dense rows.
    flat = x.reshape(-1)
    rows = _round_up(n, cols) // cols

    # Byte-targeted row tile (~target_block_bytes per block), 32-row aligned.
    tile_rows = max(
        _ROW_ALIGN,
        (target_block_bytes // (cols * itemsize)) // _ROW_ALIGN * _ROW_ALIGN,
    )

    if rows <= tile_rows:
        # Single block covering the full slab; block shape == full array dims,
        # so the (8,128) divisibility rule is satisfied without row padding.
        tile_rows = rows
        rows_padded = rows
    else:
        rows_padded = _round_up(rows, tile_rows)

    total_padded = rows_padded * cols
    if total_padded != n:
        flat = jnp.pad(flat, (0, total_padded - n))
    x2 = flat.reshape(rows_padded, cols)

    grid = (rows_padded // tile_rows,)

    out2 = pl.pallas_call(
        _exp_kernel,
        out_shape=jax.ShapeDtypeStruct((rows_padded, cols), orig_dtype),
        grid_spec=pl.GridSpec(
            grid=grid,
            in_specs=[pl.BlockSpec((tile_rows, cols), lambda i: (i, 0))],
            out_specs=pl.BlockSpec((tile_rows, cols), lambda i: (i, 0)),
        ),
        compiler_params=pltpu.CompilerParams(
            # Independent row tiles -> shard grid across TCs (v7x megacore).
            dimension_semantics=("parallel",),
            # Headroom for double-buffered blocks; safe on v7x's 64 MiB VMEM
            # as well as v5e/v6e's 128 MiB.
            vmem_limit_bytes=48 * 1024 * 1024,
        ),
        # Advisory cost hint: mem-bound elementwise with n transcendentals.
        cost_estimate=pl.CostEstimate(
            flops=0,
            transcendentals=n,
            bytes_accessed=2 * n * itemsize,
        ),
    )(x2)

    # Drop the padding and restore the original shape.
    return out2.reshape(-1)[:n].reshape(orig_shape)


if __name__ == "__main__":
    key = jax.random.PRNGKey(0)
    # NCHW input, matching the PyTorch module's typical use: batch=2, channels=4, 16x16.
    x = jax.random.normal(key, (2, 4, 16, 16), dtype=jnp.float32)

    y = exp_pallas(x)
    jax.block_until_ready(y)

    # Correctness check against plain JAX reference.
    y_ref = jnp.exp(x)
    assert y.shape == x.shape and y.dtype == x.dtype
    assert jnp.allclose(y, y_ref, rtol=1e-6, atol=1e-6)

    print("KERNEL_OK")
</pallas_src>

<mosaic_0001>
module attributes {stable_mosaic.version = 11 : i64} {
  func.func @_exp_kernel(%arg0: i32, %arg1: memref<2x1024xf32, #tpu.memory_space<vmem>>, %arg2: memref<2x1024xf32, #tpu.memory_space<vmem>>) attributes {dimension_semantics = [#tpu.dimension_semantics<parallel>], iteration_bounds = array<i64: 1>, scalar_prefetch = 0 : i64, scratch_operands = 0 : i64, tpu.core_type = #tpu.core_type<tc>, window_params = [{transform_indices = @transform_0, window_bounds = array<i64: 2, 1024>}, {transform_indices = @transform_1, window_bounds = array<i64: 2, 1024>}]} {
    %c0 = arith.constant 0 : index
    %c0_0 = arith.constant 0 : index
    %0 = vector.load %arg1[%c0, %c0_0] : memref<2x1024xf32, #tpu.memory_space<vmem>>, vector<2x1024xf32>
    %1 = math.exp %0 : vector<2x1024xf32>
    %c0_1 = arith.constant 0 : index
    %c0_2 = arith.constant 0 : index
    %2 = vector.load %arg2[%c0_1, %c0_2] : memref<2x1024xf32, #tpu.memory_space<vmem>>, vector<2x1024xf32>
    tpu.vector_store %arg2[%c0_1, %c0_2], %1 {strides = array<i32>} : memref<2x1024xf32, #tpu.memory_space<vmem>>, vector<2x1024xf32>,
    return
  }
  func.func @transform_0(%arg0: i32) -> (i32, i32) {
    %c0_i32 = arith.constant 0 : i32
    %c0_i32_0 = arith.constant 0 : i32
    return %arg0, %c0_i32 : i32, i32
  }
  func.func @transform_1(%arg0: i32) -> (i32, i32) {
    %c0_i32 = arith.constant 0 : i32
    %c0_i32_0 = arith.constant 0 : i32
    return %arg0, %c0_i32 : i32, i32
  }
}

</mosaic_0001>

<llo_original>
// kernel: tpu_custom_call.1
$region0: #{tpu_custom_call.1}
  #allocation0 [shape = 'u32[]', space=smem, size = 0x4, offset = 0x4, fixed_abs, tag = 'smem constant byte address 0x4 - core index']
  #allocation1 [shape = 'u32[144,128]{1,0:T(1,128)}', space=vmem, size = 0x12000, scoped, tag = 'internal scratch']
  %s0 = inlined_call_operand.hbm [shape: f32[2,1024], index: 0, kind: input, shape index: {}]
  %s1 = inlined_call_operand.hbm [shape: f32[2,1024], index: 1, kind: output, shape index: {}]
  %s2 = sld [smem:[#allocation0]]
  $region18: #{tpu_custom_call.1} parent=0
    _
  %s4 = ssub.s32 1, %s2
  %s5 = scalar_select 0, %s4, %s2
  $region1: #{tpu_custom_call.1} parent=0
    #allocation2 [shape = 'u8[8192]{0}', space=vmem, size = 0x2000, scoped, tag = 'input window, operand 0, single buffered']
    #allocation3 [shape = 's32[1]{0}', space=sflag, size = 0x4, scoped, tag = 'scoped memory for tpu_custom_call.1']
    #allocation4 [shape = 's32[1]{0}', space=sflag, size = 0x4, scoped, tag = 'scoped memory for tpu_custom_call.1']
    #allocation5 [shape = 'u8[8192]{0}', space=vmem, size = 0x2000, scoped, tag = 'output window, operand 0, single buffered']
    %6 = vsyncpa [#allocation3], 0
    %7 = vsyncpa [#allocation4], 0
    // Predicated region
    $region2: #{tpu_custom_call.1} parent=1 // pred_check
      _
    $region3: #{tpu_custom_call.1} parent=1 // pred_check_branch
      %9 = sbr.rel (0) target = $region5
    $region4: #{tpu_custom_call.1} parent=1 // pred_region
      %s11 = ssub.s32 256, 256
      %12 = vsyncadd [#allocation3], %s11
      %s14 = sshll.u32 [#allocation2], 4
      %s15 = int_to_ptr.vmem [resolvable:$true] %s14
      %17 = dma.hbm_to_vmem [thread:$0]  %s0, 256, %s15, [#allocation3]
    $region5: #{tpu_custom_call.1} parent=1 // pred_fallthru
      _
    // Predicated region
    $region6: #{tpu_custom_call.1} parent=1 // pred_check
      _
    $region7: #{tpu_custom_call.1} parent=1 // pred_check_branch
      %19 = sbr.rel (0) target = $region9
    $region8: #{tpu_custom_call.1} parent=1 // pred_region
      %20 = dma.done [#allocation3], 256
    $region9: #{tpu_custom_call.1} parent=1 // pred_fallthru
      _
    %v21 = vld [vmem:[#allocation2] sm:$0xff]
    %v22 = vld [vmem:[#allocation2 + $0x8] sm:$0xff]
    %v23 = vmul.f32 %v21, 1.442695
    %v24 = vpow.pop %v23
    %v25 = vmul.f32 %v22, 1.442695
    %v26 = vpow.pop %v25
    %27 = vst [vmem:[#allocation5] sm:$0xff] %v24
    %28 = vst [vmem:[#allocation5 + $0x8] sm:$0xff] %v26
    // Predicated region
    $region10: #{tpu_custom_call.1} parent=1 // pred_check
      _
    $region11: #{tpu_custom_call.1} parent=1 // pred_check_branch
      %30 = sbr.rel (0) target = $region13
    $region12: #{tpu_custom_call.1} parent=1 // pred_region
      %s32 = ssub.s32 256, 256
      %33 = vsyncadd [#allocation4], %s32
      %s35 = sshll.u32 [#allocation5], 4
      %s36 = int_to_ptr.vmem [resolvable:$true] %s35
      %38 = dma.vmem_to_hbm [thread:$0]  %s36, 256, %s1, [#allocation4]
    $region13: #{tpu_custom_call.1} parent=1 // pred_fallthru
      _
    // Predicated region
    $region14: #{tpu_custom_call.1} parent=1 // pred_check
      _
    $region15: #{tpu_custom_call.1} parent=1 // pred_check_branch
      %40 = sbr.rel (0) target = $region17
    $region16: #{tpu_custom_call.1} parent=1 // pred_region
      %41 = dma.done [#allocation4], 256
    $region17: #{tpu_custom_call.1} parent=1 // pred_fallthru
      _
    %42 = vsyncpa [#allocation3], 1
    %43 = vsyncpa [#allocation4], 1

</llo_original>
